<compile_context>
chip_gen: v5e
topology: v5e:2x2
jax: 0.10.0
libtpu: 0.0.40
codegen_flags: <defaults>
</compile_context>

<pallas_src>
import jax
import jax.numpy as jnp
from jax import lax
from jax.experimental import pallas as pl
from jax.experimental.pallas import tpu as pltpu


def prediction_network_forward(embedded_state, params, *, tile_n: int = 512):
    """Pallas implementation of PredictionNetwork.forward.

    embedded_state: (B, D, L) float32/bfloat16 (PyTorch NCL layout)
    params: dict with w1..w4 (C_out, C_in), b1..b4 (C_out,), w_head (A, 2*D)
    returns: (B, A) -- tanh(action_head(avg_pool(action_predictor(x))))
    """
    B, D, L = embedded_state.shape
    A = params["w_head"].shape[0]
    out_size = 2 * D
    cdt = embedded_state.dtype  # MXU operand dtype (f32 here; bf16 also supported)

    # --- tiling over the length axis ---------------------------------------
    if L <= tile_n:
        TN = L                        # single full-extent tile
    else:
        TN = tile_n
        if TN % 128 != 0:
            raise ValueError("tile_n must be a multiple of 128 when L > tile_n")
    num_tiles = pl.cdiv(L, TN)
    needs_mask = (L % TN) != 0

    # --- weight-stationary operands (no transposes of the activation) ------
    w = [params[f"w{i}"].astype(cdt) for i in range(1, 5)]            # (C_out, C_in)
    b = [params[f"b{i}"].astype(jnp.float32).reshape(-1, 1)           # (C_out, 1)
         for i in range(1, 5)]
    wh = params["w_head"].astype(cdt)                                 # (A, 2D)

    # --- cost estimate (memory-bound tiny kernel; helps XLA scheduling) ----
    h1, h2, h3 = 2 * D, 3 * D, 3 * D
    flops = 2 * B * L * (D * h1 + h1 * h2 + h2 * h3 + h3 * out_size) \
        + 2 * B * out_size * A
    bytes_accessed = (
        embedded_state.size * embedded_state.dtype.itemsize
        + sum(int(a.size) * a.dtype.itemsize for a in w)
        + sum(int(a.size) * a.dtype.itemsize for a in b)
        + int(wh.size) * wh.dtype.itemsize
        + B * A * jnp.dtype(cdt).itemsize
    )
    cost = pl.CostEstimate(flops=int(flops), transcendentals=int(B * A),
                           bytes_accessed=int(bytes_accessed))

    # --- fused kernel -------------------------------------------------------
    def kernel(x_ref, w1_ref, b1_ref, w2_ref, b2_ref, w3_ref, b3_ref,
               w4_ref, b4_ref, wh_ref, o_ref, acc_ref):
        li = pl.program_id(1)

        @pl.when(li == 0)
        def _init():
            acc_ref[...] = jnp.zeros_like(acc_ref)

        x = x_ref[...]                                                 # (D, TN)

        # conv1 -> ReLU -> conv2 -> ReLU -> conv3 -> ReLU -> conv4  (all W @ X)
        h = jnp.dot(w1_ref[...], x, preferred_element_type=jnp.float32) + b1_ref[...]
        h = jnp.maximum(h, 0.0).astype(cdt)
        h = jnp.dot(w2_ref[...], h, preferred_element_type=jnp.float32) + b2_ref[...]
        h = jnp.maximum(h, 0.0).astype(cdt)
        h = jnp.dot(w3_ref[...], h, preferred_element_type=jnp.float32) + b3_ref[...]
        h = jnp.maximum(h, 0.0).astype(cdt)
        h = jnp.dot(w4_ref[...], h, preferred_element_type=jnp.float32) + b4_ref[...]
        # h: (2D, TN) f32

        if needs_mask:  # static python branch: only emitted when L % TN != 0
            col = li * TN + lax.broadcasted_iota(jnp.int32, h.shape, 1)
            h = jnp.where(col < L, h, 0.0)

        # running sum for AdaptiveAvgPool1d(1)
        acc_ref[...] += jnp.sum(h, axis=1, keepdims=True)              # (2D, 1)

        @pl.when(li == pl.num_programs(1) - 1)
        def _finalize():
            pooled = (acc_ref[...] * (1.0 / L)).astype(cdt)            # (2D, 1)
            logits = jnp.dot(wh_ref[...], pooled,
                             preferred_element_type=jnp.float32)       # (A, 1)
            o_ref[...] = jnp.tanh(logits).astype(o_ref.dtype)

    const_map = lambda bi, li: (0, 0)
    weight_args = [w[0], b[0], w[1], b[1], w[2], b[2], w[3], b[3], wh]
    weight_specs = [pl.BlockSpec(tuple(a.shape), const_map) for a in weight_args]

    out3 = pl.pallas_call(
        kernel,
        out_shape=jax.ShapeDtypeStruct((B, A, 1), cdt),
        grid_spec=pltpu.PrefetchScalarGridSpec(
            num_scalar_prefetch=0,
            grid=(B, num_tiles),                       # reduction (length) axis last
            in_specs=[pl.BlockSpec((None, D, TN), lambda bi, li: (bi, 0, li))]
                     + weight_specs,
            out_specs=pl.BlockSpec((None, A, 1), lambda bi, li: (bi, 0, 0)),
            scratch_shapes=[pltpu.VMEM((out_size, 1), jnp.float32)],
        ),
        compiler_params=pltpu.CompilerParams(
            dimension_semantics=("parallel", "arbitrary")),
        cost_estimate=cost,
    )(embedded_state, *weight_args)

    return out3.reshape(B, A)


def init_params(key, input_state_dim, action_space):
    """PyTorch-default-style init (uniform +/- 1/sqrt(fan_in))."""
    D = input_state_dim
    chans = [D, 2 * D, 3 * D, 3 * D, 2 * D]
    keys = jax.random.split(key, 2 * (len(chans) - 1) + 1)
    params = {}
    for i in range(1, len(chans)):
        fan_in = chans[i - 1]
        bound = 1.0 / (fan_in ** 0.5)
        params[f"w{i}"] = jax.random.uniform(
            keys[2 * (i - 1)], (chans[i], chans[i - 1]), jnp.float32, -bound, bound)
        params[f"b{i}"] = jax.random.uniform(
            keys[2 * (i - 1) + 1], (chans[i],), jnp.float32, -bound, bound)
    out_size = 2 * D
    bound = 1.0 / (out_size ** 0.5)
    params["w_head"] = jax.random.uniform(
        keys[-1], (action_space, out_size), jnp.float32, -bound, bound)
    return params


def reference_forward(x, params):
    """Pure-JAX reference (matches the PyTorch module exactly)."""
    h = x
    for i in range(1, 5):
        h = jnp.einsum("oc,bcn->bon", params[f"w{i}"], h) \
            + params[f"b{i}"][None, :, None]
        if i < 4:
            h = jnp.maximum(h, 0.0)
    pooled = jnp.mean(h, axis=-1)                         # AdaptiveAvgPool1d(1)+squeeze
    return jnp.tanh(pooled @ params["w_head"].T)          # Linear(bias=False) -> Tanh


if __name__ == "__main__":
    key = jax.random.PRNGKey(0)
    k_x, k_p = jax.random.split(key, 2)

    B = 2                  # batch
    input_state_dim = 16   # D  -> channels 16, 32, 48, 48, 32 (sublane-aligned)
    action_space = 4       # A
    L = 300                # positions; with tile_n=128 this exercises the tiled
                           # reduction grid AND the masked partial last tile

    embedded_state = jax.random.normal(k_x, (B, input_state_dim, L), jnp.float32)
    params = init_params(k_p, input_state_dim, action_space)

    out = prediction_network_forward(embedded_state, params, tile_n=128)
    out = jax.block_until_ready(out)

    ref = reference_forward(embedded_state, params)
    assert out.shape == (B, action_space)
    assert jnp.allclose(out, ref, atol=1e-4, rtol=1e-4), (
        f"max abs diff {jnp.max(jnp.abs(out - ref))}")

    print("KERNEL_OK")
</pallas_src>

<mosaic_0001>
module attributes {stable_mosaic.version = 11 : i64} {
  func.func @kernel(%arg0: i32, %arg1: i32, %arg2: memref<1x16x128xf32, #tpu.memory_space<vmem>>, %arg3: memref<32x16xf32, #tpu.memory_space<vmem>>, %arg4: memref<32x1xf32, #tpu.memory_space<vmem>>, %arg5: memref<48x32xf32, #tpu.memory_space<vmem>>, %arg6: memref<48x1xf32, #tpu.memory_space<vmem>>, %arg7: memref<48x48xf32, #tpu.memory_space<vmem>>, %arg8: memref<48x1xf32, #tpu.memory_space<vmem>>, %arg9: memref<32x48xf32, #tpu.memory_space<vmem>>, %arg10: memref<32x1xf32, #tpu.memory_space<vmem>>, %arg11: memref<4x32xf32, #tpu.memory_space<vmem>>, %arg12: memref<1x4x1xf32, #tpu.memory_space<vmem>>, %arg13: memref<32x1xf32, #tpu.memory_space<vmem>>) attributes {dimension_semantics = [#tpu.dimension_semantics<parallel>, #tpu.dimension_semantics<arbitrary>], iteration_bounds = array<i64: 2, 3>, scalar_prefetch = 0 : i64, scratch_operands = 1 : i64, tpu.core_type = #tpu.core_type<tc>, window_params = [{transform_indices = @transform_0, window_bounds = array<i64: 1, 16, 128>}, {pipeline_mode = #tpu.pipeline_mode<synchronous>, transform_indices = @transform_1, window_bounds = array<i64: 32, 16>}, {pipeline_mode = #tpu.pipeline_mode<synchronous>, transform_indices = @transform_2, window_bounds = array<i64: 32, 1>}, {pipeline_mode = #tpu.pipeline_mode<synchronous>, transform_indices = @transform_3, window_bounds = array<i64: 48, 32>}, {pipeline_mode = #tpu.pipeline_mode<synchronous>, transform_indices = @transform_4, window_bounds = array<i64: 48, 1>}, {pipeline_mode = #tpu.pipeline_mode<synchronous>, transform_indices = @transform_5, window_bounds = array<i64: 48, 48>}, {pipeline_mode = #tpu.pipeline_mode<synchronous>, transform_indices = @transform_6, window_bounds = array<i64: 48, 1>}, {pipeline_mode = #tpu.pipeline_mode<synchronous>, transform_indices = @transform_7, window_bounds = array<i64: 32, 48>}, {pipeline_mode = #tpu.pipeline_mode<synchronous>, transform_indices = @transform_8, window_bounds = array<i64: 32, 1>}, {pipeline_mode = #tpu.pipeline_mode<synchronous>, transform_indices = @transform_9, window_bounds = array<i64: 4, 32>}, {transform_indices = @transform_10, window_bounds = array<i64: 1, 4, 1>}]} {
    %c0_i32 = arith.constant 0 : i32
    %0 = arith.cmpi eq, %arg1, %c0_i32 : i32
    %1 = arith.extui %0 : i1 to i32
    %c0_i32_0 = arith.constant 0 : i32
    %2 = arith.cmpi ne, %1, %c0_i32_0 : i32
    scf.if %2 {
      %cst_32 = arith.constant 0.000000e+00 : f32
      %47 = vector.broadcast %cst_32 : f32 to vector<32x1xf32>
      %c0_33 = arith.constant 0 : index
      %c0_34 = arith.constant 0 : index
      %48 = vector.load %arg13[%c0_33, %c0_34] : memref<32x1xf32, #tpu.memory_space<vmem>>, vector<32x1xf32>
      tpu.vector_store %arg13[%c0_33, %c0_34], %47 {strides = array<i32>} : memref<32x1xf32, #tpu.memory_space<vmem>>, vector<32x1xf32>,
    } else {
    }
    %c0 = arith.constant 0 : index
    %c0_1 = arith.constant 0 : index
    %c0_2 = arith.constant 0 : index
    %3 = vector.load %arg2[%c0, %c0_1, %c0_2] : memref<1x16x128xf32, #tpu.memory_space<vmem>>, vector<1x16x128xf32>
    %4 = vector.shape_cast %3 : vector<1x16x128xf32> to vector<16x128xf32>
    %c0_3 = arith.constant 0 : index
    %c0_4 = arith.constant 0 : index
    %5 = vector.load %arg3[%c0_3, %c0_4] : memref<32x16xf32, #tpu.memory_space<vmem>>, vector<32x16xf32>
    %cst = arith.constant dense<0.000000e+00> : vector<32x128xf32>
    %6 = tpu.matmul %5, %4, %cst {dimension_numbers = #tpu.dot_dimension_numbers<[1], [0], [0], [1], [0, 0, 1, 1], [], []>} : vector<32x16xf32>, vector<16x128xf32>, vector<32x128xf32> -> vector<32x128xf32>
    %c0_5 = arith.constant 0 : index
    %c0_6 = arith.constant 0 : index
    %7 = vector.load %arg4[%c0_5, %c0_6] : memref<32x1xf32, #tpu.memory_space<vmem>>, vector<32x1xf32>
    %8 = vector.broadcast %7 : vector<32x1xf32> to vector<32x128xf32>
    %9 = arith.addf %6, %8 : vector<32x128xf32>
    %cst_7 = arith.constant 0.000000e+00 : f32
    %10 = vector.broadcast %cst_7 : f32 to vector<32x128xf32>
    %11 = arith.maximumf %9, %10 : vector<32x128xf32>
    %c0_8 = arith.constant 0 : index
    %c0_9 = arith.constant 0 : index
    %12 = vector.load %arg5[%c0_8, %c0_9] : memref<48x32xf32, #tpu.memory_space<vmem>>, vector<48x32xf32>
    %cst_10 = arith.constant dense<0.000000e+00> : vector<48x128xf32>
    %13 = tpu.matmul %12, %11, %cst_10 {dimension_numbers = #tpu.dot_dimension_numbers<[1], [0], [0], [1], [0, 0, 1, 1], [], []>} : vector<48x32xf32>, vector<32x128xf32>, vector<48x128xf32> -> vector<48x128xf32>
    %c0_11 = arith.constant 0 : index
    %c0_12 = arith.constant 0 : index
    %14 = vector.load %arg6[%c0_11, %c0_12] : memref<48x1xf32, #tpu.memory_space<vmem>>, vector<48x1xf32>
    %15 = vector.broadcast %14 : vector<48x1xf32> to vector<48x128xf32>
    %16 = arith.addf %13, %15 : vector<48x128xf32>
    %cst_13 = arith.constant 0.000000e+00 : f32
    %17 = vector.broadcast %cst_13 : f32 to vector<48x128xf32>
    %18 = arith.maximumf %16, %17 : vector<48x128xf32>
    %c0_14 = arith.constant 0 : index
    %c0_15 = arith.constant 0 : index
    %19 = vector.load %arg7[%c0_14, %c0_15] : memref<48x48xf32, #tpu.memory_space<vmem>>, vector<48x48xf32>
    %cst_16 = arith.constant dense<0.000000e+00> : vector<48x128xf32>
    %20 = tpu.matmul %19, %18, %cst_16 {dimension_numbers = #tpu.dot_dimension_numbers<[1], [0], [0], [1], [0, 0, 1, 1], [], []>} : vector<48x48xf32>, vector<48x128xf32>, vector<48x128xf32> -> vector<48x128xf32>
    %c0_17 = arith.constant 0 : index
    %c0_18 = arith.constant 0 : index
    %21 = vector.load %arg8[%c0_17, %c0_18] : memref<48x1xf32, #tpu.memory_space<vmem>>, vector<48x1xf32>
    %22 = vector.broadcast %21 : vector<48x1xf32> to vector<48x128xf32>
    %23 = arith.addf %20, %22 : vector<48x128xf32>
    %cst_19 = arith.constant 0.000000e+00 : f32
    %24 = vector.broadcast %cst_19 : f32 to vector<48x128xf32>
    %25 = arith.maximumf %23, %24 : vector<48x128xf32>
    %c0_20 = arith.constant 0 : index
    %c0_21 = arith.constant 0 : index
    %26 = vector.load %arg9[%c0_20, %c0_21] : memref<32x48xf32, #tpu.memory_space<vmem>>, vector<32x48xf32>
    %cst_22 = arith.constant dense<0.000000e+00> : vector<32x128xf32>
    %27 = tpu.matmul %26, %25, %cst_22 {dimension_numbers = #tpu.dot_dimension_numbers<[1], [0], [0], [1], [0, 0, 1, 1], [], []>} : vector<32x48xf32>, vector<48x128xf32>, vector<32x128xf32> -> vector<32x128xf32>
    %c0_23 = arith.constant 0 : index
    %c0_24 = arith.constant 0 : index
    %28 = vector.load %arg10[%c0_23, %c0_24] : memref<32x1xf32, #tpu.memory_space<vmem>>, vector<32x1xf32>
    %29 = vector.broadcast %28 : vector<32x1xf32> to vector<32x128xf32>
    %30 = arith.addf %27, %29 : vector<32x128xf32>
    %c128_i32 = arith.constant 128 : i32
    %31 = arith.muli %arg1, %c128_i32 : i32
    %32 = tpu.iota {dimensions = array<i32: 1>} : vector<32x128xi32>
    %33 = vector.broadcast %31 : i32 to vector<32x128xi32>
    %34 = arith.addi %33, %32 : vector<32x128xi32>
    %c300_i32 = arith.constant 300 : i32
    %35 = vector.broadcast %c300_i32 : i32 to vector<32x128xi32>
    %36 = arith.cmpi slt, %34, %35 : vector<32x128xi32>
    %cst_25 = arith.constant 0.000000e+00 : f32
    %37 = vector.broadcast %cst_25 : f32 to vector<32x128xf32>
    %38 = arith.select %36, %30, %37 : vector<32x128xi1>, vector<32x128xf32>
    %c0_26 = arith.constant 0 : index
    %c0_27 = arith.constant 0 : index
    %39 = vector.load %arg13[%c0_26, %c0_27] : memref<32x1xf32, #tpu.memory_space<vmem>>, vector<32x1xf32>
    %cst_28 = arith.constant dense<0.000000e+00> : vector<32xf32>
    %40 = vector.multi_reduction <add>, %38, %cst_28 [1] : vector<32x128xf32> to vector<32xf32>
    %41 = vector.shape_cast %40 : vector<32xf32> to vector<32x1xf32>
    %42 = arith.addf %39, %41 : vector<32x1xf32>
    %c0_29 = arith.constant 0 : index
    %c0_30 = arith.constant 0 : index
    %43 = vector.load %arg13[%c0_29, %c0_30] : memref<32x1xf32, #tpu.memory_space<vmem>>, vector<32x1xf32>
    tpu.vector_store %arg13[%c0_29, %c0_30], %42 {strides = array<i32>} : memref<32x1xf32, #tpu.memory_space<vmem>>, vector<32x1xf32>,
    %c2_i32 = arith.constant 2 : i32
    %44 = arith.cmpi eq, %arg1, %c2_i32 : i32
    %45 = arith.extui %44 : i1 to i32
    %c0_i32_31 = arith.constant 0 : i32
    %46 = arith.cmpi ne, %45, %c0_i32_31 : i32
    scf.if %46 {
      %c0_32 = arith.constant 0 : index
      %c0_33 = arith.constant 0 : index
      %47 = vector.load %arg13[%c0_32, %c0_33] : memref<32x1xf32, #tpu.memory_space<vmem>>, vector<32x1xf32>
      %cst_34 = arith.constant 0.00333333341 : f32
      %48 = vector.broadcast %cst_34 : f32 to vector<32x1xf32>
      %49 = arith.mulf %47, %48 : vector<32x1xf32>
      %c0_35 = arith.constant 0 : index
      %c0_36 = arith.constant 0 : index
      %50 = vector.load %arg11[%c0_35, %c0_36] : memref<4x32xf32, #tpu.memory_space<vmem>>, vector<4x32xf32>
      %cst_37 = arith.constant dense<0.000000e+00> : vector<4x1xf32>
      %51 = tpu.matmul %50, %49, %cst_37 {dimension_numbers = #tpu.dot_dimension_numbers<[1], [0], [0], [1], [0, 0, 1, 1], [], []>} : vector<4x32xf32>, vector<32x1xf32>, vector<4x1xf32> -> vector<4x1xf32>
      %52 = math.tanh %51 : vector<4x1xf32>
      %c0_38 = arith.constant 0 : index
      %c0_39 = arith.constant 0 : index
      %c0_40 = arith.constant 0 : index
      %53 = vector.load %arg12[%c0_38, %c0_39, %c0_40] : memref<1x4x1xf32, #tpu.memory_space<vmem>>, vector<1x4x1xf32>
      %54 = vector.shape_cast %53 : vector<1x4x1xf32> to vector<4x1xf32>
      %55 = vector.shape_cast %52 : vector<4x1xf32> to vector<1x4x1xf32>
      tpu.vector_store %arg12[%c0_38, %c0_39, %c0_40], %55 {strides = array<i32>} : memref<1x4x1xf32, #tpu.memory_space<vmem>>, vector<1x4x1xf32>,
    } else {
    }
    return
  }
  func.func @transform_0(%arg0: i32, %arg1: i32) -> (i32, i32, i32) {
    %c0_i32 = arith.constant 0 : i32
    %c0_i32_0 = arith.constant 0 : i32
    return %arg0, %c0_i32, %arg1 : i32, i32, i32
  }
  func.func @transform_1(%arg0: i32, %arg1: i32) -> (i32, i32) {
    %c0_i32 = arith.constant 0 : i32
    %c0_i32_0 = arith.constant 0 : i32
    %c0_i32_1 = arith.constant 0 : i32
    return %c0_i32, %c0_i32_0 : i32, i32
  }
  func.func @transform_2(%arg0: i32, %arg1: i32) -> (i32, i32) {
    %c0_i32 = arith.constant 0 : i32
    %c0_i32_0 = arith.constant 0 : i32
    %c0_i32_1 = arith.constant 0 : i32
    return %c0_i32, %c0_i32_0 : i32, i32
  }
  func.func @transform_3(%arg0: i32, %arg1: i32) -> (i32, i32) {
    %c0_i32 = arith.constant 0 : i32
    %c0_i32_0 = arith.constant 0 : i32
    %c0_i32_1 = arith.constant 0 : i32
    return %c0_i32, %c0_i32_0 : i32, i32
  }
  func.func @transform_4(%arg0: i32, %arg1: i32) -> (i32, i32) {
    %c0_i32 = arith.constant 0 : i32
    %c0_i32_0 = arith.constant 0 : i32
    %c0_i32_1 = arith.constant 0 : i32
    return %c0_i32, %c0_i32_0 : i32, i32
  }
  func.func @transform_5(%arg0: i32, %arg1: i32) -> (i32, i32) {
    %c0_i32 = arith.constant 0 : i32
    %c0_i32_0 = arith.constant 0 : i32
    %c0_i32_1 = arith.constant 0 : i32
    return %c0_i32, %c0_i32_0 : i32, i32
  }
  func.func @transform_6(%arg0: i32, %arg1: i32) -> (i32, i32) {
    %c0_i32 = arith.constant 0 : i32
    %c0_i32_0 = arith.constant 0 : i32
    %c0_i32_1 = arith.constant 0 : i32
    return %c0_i32, %c0_i32_0 : i32, i32
  }
  func.func @transform_7(%arg0: i32, %arg1: i32) -> (i32, i32) {
    %c0_i32 = arith.constant 0 : i32
    %c0_i32_0 = arith.constant 0 : i32
    %c0_i32_1 = arith.constant 0 : i32
    return %c0_i32, %c0_i32_0 : i32, i32
  }
  func.func @transform_8(%arg0: i32, %arg1: i32) -> (i32, i32) {
    %c0_i32 = arith.constant 0 : i32
    %c0_i32_0 = arith.constant 0 : i32
    %c0_i32_1 = arith.constant 0 : i32
    return %c0_i32, %c0_i32_0 : i32, i32
  }
  func.func @transform_9(%arg0: i32, %arg1: i32) -> (i32, i32) {
    %c0_i32 = arith.constant 0 : i32
    %c0_i32_0 = arith.constant 0 : i32
    %c0_i32_1 = arith.constant 0 : i32
    return %c0_i32, %c0_i32_0 : i32, i32
  }
  func.func @transform_10(%arg0: i32, %arg1: i32) -> (i32, i32, i32) {
    %c0_i32 = arith.constant 0 : i32
    %c0_i32_0 = arith.constant 0 : i32
    %c0_i32_1 = arith.constant 0 : i32
    return %arg0, %c0_i32, %c0_i32_0 : i32, i32, i32
  }
}

</mosaic_0001>

<llo_original>
// kernel: tpu_custom_call.1
$region0: #{tpu_custom_call.1}
  #allocation0 [shape = 'u32[]', space=smem, size = 0x4, offset = 0x4, fixed_abs, tag = 'smem constant byte address 0x4 - core index']
  #allocation1 [shape = 'u32[72,128]{1,0:T(1,128)}', space=vmem, size = 0x9000, scoped, tag = 'internal scratch']
  #allocation2 [shape = 'f32[32,1]{1,0:T(8,128)}', space=vmem, size = 0x4000, scoped, tag = 'scratch operand']
  %s0 = inlined_call_operand.vmem [shape: f32[2,16,300], index: 0, kind: input, shape index: {}]
  %s1 = inlined_call_operand.vmem [shape: f32[32,16], index: 1, kind: input, shape index: {}]
  %s2 = inlined_call_operand.vmem [shape: f32[32,1], index: 2, kind: input, shape index: {}]
  %s3 = inlined_call_operand.vmem [shape: f32[48,32], index: 3, kind: input, shape index: {}]
  %s4 = inlined_call_operand.vmem [shape: f32[48,1], index: 4, kind: input, shape index: {}]
  %s5 = inlined_call_operand.vmem [shape: f32[48,48], index: 5, kind: input, shape index: {}]
  %s6 = inlined_call_operand.vmem [shape: f32[48,1], index: 6, kind: input, shape index: {}]
  %s7 = inlined_call_operand.vmem [shape: f32[32,48], index: 7, kind: input, shape index: {}]
  %s8 = inlined_call_operand.vmem [shape: f32[32,1], index: 8, kind: input, shape index: {}]
  %s9 = inlined_call_operand.vmem [shape: f32[4,32], index: 9, kind: input, shape index: {}]
  %s10 = inlined_call_operand.vmem [shape: f32[2,4,1], index: 10, kind: output, shape index: {}]
  %s11 = sld [smem:[#allocation0]]
  $region119: #{tpu_custom_call.1} parent=0
    _
  %s13 = ssub.s32 1, %s11
  %s14 = scalar_select 0, %s13, %s11
  $region1: #{tpu_custom_call.1} parent=0
    #allocation3 [shape = 'u8[16384]{0}', space=vmem, size = 0x4000, scoped, tag = 'input window, operand 0']
    loop: start=0, step=1, limit=8
    $region2: #{tpu_custom_call.1} parent=1 // loop_pre_header
      _
    $region3: #{tpu_custom_call.1} parent=1 // loop_header
      %s16 = sphi 0, %s20
      %p17 = scmp.ge.s32.totalorder %s16, 8
      %s23 = sphi 0, %s35
      %s24 = sphi 0, %s31
      %s25 = sphi 0, %s23
      %s26 = sphi 0, %s24
      %s27 = sphi 0, %s25
      %s28 = sphi 0, %s26
      %s40 = sphi 0, %s42
      %s43 = sphi 0, %s40
      %s44 = sphi 0, %s43
      %s60 = sphi 0, %s44
      %s64 = sphi 0, %s64
      %s66 = sphi 0, %s64
      %s67 = sphi 0, %s66
      %s81 = sphi 0, %s67
      %s85 = sphi 0, %s85
      %s87 = sphi 0, %s85
      %s88 = sphi 0, %s87
      %s102 = sphi 0, %s88
      %s106 = sphi 0, %s106
      %s108 = sphi 0, %s106
      %s109 = sphi 0, %s108
      %s123 = sphi 0, %s109
      %s127 = sphi 0, %s127
      %s129 = sphi 0, %s127
      %s130 = sphi 0, %s129
      %s144 = sphi 0, %s130
      %s148 = sphi 0, %s148
      %s150 = sphi 0, %s148
      %s151 = sphi 0, %s150
      %s165 = sphi 0, %s151
      %s169 = sphi 0, %s169
      %s171 = sphi 0, %s169
      %s172 = sphi 0, %s171
      %s186 = sphi 0, %s172
      %s190 = sphi 0, %s190
      %s192 = sphi 0, %s190
      %s193 = sphi 0, %s192
      %s207 = sphi 0, %s193
      %s211 = sphi 0, %s211
      %s213 = sphi 0, %s211
      %s214 = sphi 0, %s213
      %s228 = sphi 0, %s214
      %s232 = sphi 0, %s232
      %s234 = sphi 0, %s232
      %s235 = sphi 0, %s234
      %s249 = sphi 0, %s235
      %s255 = sphi 0, %s257
      %s258 = sphi 0, %s255
      %s259 = sphi 0, %s258
      %s275 = sphi 0, %s259
    $region4: #{tpu_custom_call.1} parent=1 // loop_header_branch
      %19 = sbr.rel (%p17) target = $region8
    $region5: #{tpu_custom_call.1} parent=1 // loop_body
      %s21 = ssub.s32 %s16, 1
      %s22 = ssub.s32 %s16, 2
      %s29 = sadd.s32 1, %s24
      %p30 = scmp.ge.s32.totalorder %s29, 3
      %s31 = scalar_select %p30, 0, %s29
      %s32 = sadd.s32 1, %s23
      %s33 = scalar_select %p30, %s32, %s23
      %p34 = scmp.ge.s32.totalorder %s33, 2
      %s35 = scalar_select %p34, 0, %s33
      %s36 = ssub.s32 %s23, %s35
      %s37 = ssub.s32 %s24, %s31
      %s38 = sor.u32 %s36, %s37
      %p39 = scmp.eq.s32.totalorder %s38, 0
      %s41 = sadd.s32 %s40, 1
      %s42 = scalar_select %p39, %s40, %s41
      %p45 = pneg %p39
      %p46 = scmp.eq.s32.totalorder %s16, 5
      %p47 = por %p45, %p46
      %p48 = scmp.ne.s32.totalorder %s40, %s43
      %p49 = scmp.eq.s32.totalorder %s16, 0
      %p50 = por %p48, %p49
      %p51 = scmp.ne.s32.totalorder %s40, %s43
      %p52 = scmp.eq.s32.totalorder %s21, 5
      %p53 = por %p51, %p52
      %p54 = scmp.ne.s32.totalorder %s43, %s44
      %p55 = scmp.eq.s32.totalorder %s21, 0
      %p56 = por %p54, %p55
      %p57 = scmp.ne.s32.totalorder %s43, %s44
      %p58 = scmp.eq.s32.totalorder %s22, 5
      %p59 = por %p57, %p58
      %p61 = scmp.ne.s32.totalorder %s44, %s60
      %p62 = scmp.eq.s32.totalorder %s22, 0
      %p63 = por %p61, %p62
      %s65 = sadd.s32 %s64, 1
      %p68 = scmp.eq.s32.totalorder %s16, 5
      %p69 = scmp.ne.s32.totalorder %s64, %s66
      %p70 = scmp.eq.s32.totalorder %s16, 0
      %p71 = por %p69, %p70
      %p72 = scmp.ne.s32.totalorder %s64, %s66
      %p73 = scmp.eq.s32.totalorder %s21, 5
      %p74 = por %p72, %p73
      %p75 = scmp.ne.s32.totalorder %s66, %s67
      %p76 = scmp.eq.s32.totalorder %s21, 0
      %p77 = por %p75, %p76
      %p78 = scmp.ne.s32.totalorder %s66, %s67
      %p79 = scmp.eq.s32.totalorder %s22, 5
      %p80 = por %p78, %p79
      %p82 = scmp.ne.s32.totalorder %s67, %s81
      %p83 = scmp.eq.s32.totalorder %s22, 0
      %p84 = por %p82, %p83
      %s86 = sadd.s32 %s85, 1
      %p89 = scmp.eq.s32.totalorder %s16, 5
      %p90 = scmp.ne.s32.totalorder %s85, %s87
      %p91 = scmp.eq.s32.totalorder %s16, 0
      %p92 = por %p90, %p91
      %p93 = scmp.ne.s32.totalorder %s85, %s87
      %p94 = scmp.eq.s32.totalorder %s21, 5
      %p95 = por %p93, %p94
      %p96 = scmp.ne.s32.totalorder %s87, %s88
      %p97 = scmp.eq.s32.totalorder %s21, 0
      %p98 = por %p96, %p97
      %p99 = scmp.ne.s32.totalorder %s87, %s88
      %p100 = scmp.eq.s32.totalorder %s22, 5
      %p101 = por %p99, %p100
      %p103 = scmp.ne.s32.totalorder %s88, %s102
      %p104 = scmp.eq.s32.totalorder %s22, 0
      %p105 = por %p103, %p104
      %s107 = sadd.s32 %s106, 1
      %p110 = scmp.eq.s32.totalorder %s16, 5
      %p111 = scmp.ne.s32.totalorder %s106, %s108
      %p112 = scmp.eq.s32.totalorder %s16, 0
      %p113 = por %p111, %p112
      %p114 = scmp.ne.s32.totalorder %s106, %s108
      %p115 = scmp.eq.s32.totalorder %s21, 5
      %p116 = por %p114, %p115
      %p117 = scmp.ne.s32.totalorder %s108, %s109
      %p118 = scmp.eq.s32.totalorder %s21, 0
      %p119 = por %p117, %p118
      %p120 = scmp.ne.s32.totalorder %s108, %s109
      %p121 = scmp.eq.s32.totalorder %s22, 5
      %p122 = por %p120, %p121
      %p124 = scmp.ne.s32.totalorder %s109, %s123
      %p125 = scmp.eq.s32.totalorder %s22, 0
      %p126 = por %p124, %p125
      %s128 = sadd.s32 %s127, 1
      %p131 = scmp.eq.s32.totalorder %s16, 5
      %p132 = scmp.ne.s32.totalorder %s127, %s129
      %p133 = scmp.eq.s32.totalorder %s16, 0
      %p134 = por %p132, %p133
      %p135 = scmp.ne.s32.totalorder %s127, %s129
      %p136 = scmp.eq.s32.totalorder %s21, 5
      %p137 = por %p135, %p136
      %p138 = scmp.ne.s32.totalorder %s129, %s130
      %p139 = scmp.eq.s32.totalorder %s21, 0
      %p140 = por %p138, %p139
      %p141 = scmp.ne.s32.totalorder %s129, %s130
      %p142 = scmp.eq.s32.totalorder %s22, 5
      %p143 = por %p141, %p142
      %p145 = scmp.ne.s32.totalorder %s130, %s144
      %p146 = scmp.eq.s32.totalorder %s22, 0
      %p147 = por %p145, %p146
      %s149 = sadd.s32 %s148, 1
      %p152 = scmp.eq.s32.totalorder %s16, 5
      %p153 = scmp.ne.s32.totalorder %s148, %s150
      %p154 = scmp.eq.s32.totalorder %s16, 0
      %p155 = por %p153, %p154
      %p156 = scmp.ne.s32.totalorder %s148, %s150
      %p157 = scmp.eq.s32.totalorder %s21, 5
      %p158 = por %p156, %p157
      %p159 = scmp.ne.s32.totalorder %s150, %s151
      %p160 = scmp.eq.s32.totalorder %s21, 0
      %p161 = por %p159, %p160
      %p162 = scmp.ne.s32.totalorder %s150, %s151
      %p163 = scmp.eq.s32.totalorder %s22, 5
      %p164 = por %p162, %p163
      %p166 = scmp.ne.s32.totalorder %s151, %s165
      %p167 = scmp.eq.s32.totalorder %s22, 0
      %p168 = por %p166, %p167
      %s170 = sadd.s32 %s169, 1
      %p173 = scmp.eq.s32.totalorder %s16, 5
      %p174 = scmp.ne.s32.totalorder %s169, %s171
      %p175 = scmp.eq.s32.totalorder %s16, 0
      %p176 = por %p174, %p175
      %p177 = scmp.ne.s32.totalorder %s169, %s171
      %p178 = scmp.eq.s32.totalorder %s21, 5
      %p179 = por %p177, %p178
      %p180 = scmp.ne.s32.totalorder %s171, %s172
      %p181 = scmp.eq.s32.totalorder %s21, 0
      %p182 = por %p180, %p181
      %p183 = scmp.ne.s32.totalorder %s171, %s172
      %p184 = scmp.eq.s32.totalorder %s22, 5
      %p185 = por %p183, %p184
      %p187 = scmp.ne.s32.totalorder %s172, %s186
      %p188 = scmp.eq.s32.totalorder %s22, 0
      %p189 = por %p187, %p188
      %s191 = sadd.s32 %s190, 1
      %p194 = scmp.eq.s32.totalorder %s16, 5
      %p195 = scmp.ne.s32.totalorder %s190, %s192
      %p196 = scmp.eq.s32.totalorder %s16, 0
      %p197 = por %p195, %p196
      %p198 = scmp.ne.s32.totalorder %s190, %s192
      %p199 = scmp.eq.s32.totalorder %s21, 5
      %p200 = por %p198, %p199
      %p201 = scmp.ne.s32.totalorder %s192, %s193
      %p202 = scmp.eq.s32.totalorder %s21, 0
      %p203 = por %p201, %p202
      %p204 = scmp.ne.s32.totalorder %s192, %s193
      %p205 = scmp.eq.s32.totalorder %s22, 5
      %p206 = por %p204, %p205
      %p208 = scmp.ne.s32.totalorder %s193, %s207
      %p209 = scmp.eq.s32.totalorder %s22, 0
      %p210 = por %p208, %p209
      %s212 = sadd.s32 %s211, 1
      %p215 = scmp.eq.s32.totalorder %s16, 5
      %p216 = scmp.ne.s32.totalorder %s211, %s213
      %p217 = scmp.eq.s32.totalorder %s16, 0
      %p218 = por %p216, %p217
      %p219 = scmp.ne.s32.totalorder %s211, %s213
      %p220 = scmp.eq.s32.totalorder %s21, 5
      %p221 = por %p219, %p220
      %p222 = scmp.ne.s32.totalorder %s213, %s214
      %p223 = scmp.eq.s32.totalorder %s21, 0
      %p224 = por %p222, %p223
      %p225 = scmp.ne.s32.totalorder %s213, %s214
      %p226 = scmp.eq.s32.totalorder %s22, 5
      %p227 = por %p225, %p226
      %p229 = scmp.ne.s32.totalorder %s214, %s228
      %p230 = scmp.eq.s32.totalorder %s22, 0
      %p231 = por %p229, %p230
      %s233 = sadd.s32 %s232, 1
      %p236 = scmp.eq.s32.totalorder %s16, 5
      %p237 = scmp.ne.s32.totalorder %s232, %s234
      %p238 = scmp.eq.s32.totalorder %s16, 0
      %p239 = por %p237, %p238
      %p240 = scmp.ne.s32.totalorder %s232, %s234
      %p241 = scmp.eq.s32.totalorder %s21, 5
      %p242 = por %p240, %p241
      %p243 = scmp.ne.s32.totalorder %s234, %s235
      %p244 = scmp.eq.s32.totalorder %s21, 0
      %p245 = por %p243, %p244
      %p246 = scmp.ne.s32.totalorder %s234, %s235
      %p247 = scmp.eq.s32.totalorder %s22, 5
      %p248 = por %p246, %p247
      %p250 = scmp.ne.s32.totalorder %s235, %s249
      %p251 = scmp.eq.s32.totalorder %s22, 0
      %p252 = por %p250, %p251
      %s253 = ssub.s32 %s23, %s35
      %p254 = scmp.eq.s32.totalorder %s253, 0
      %s256 = sadd.s32 %s255, 1
      %s257 = scalar_select %p254, %s255, %s256
      %p260 = pneg %p254
      %p261 = scmp.eq.s32.totalorder %s16, 5
      %p262 = por %p260, %p261
      %p263 = scmp.ne.s32.totalorder %s255, %s258
      %p264 = scmp.eq.s32.totalorder %s16, 0
      %p265 = por %p263, %p264
      %p266 = scmp.ne.s32.totalorder %s255, %s258
      %p267 = scmp.eq.s32.totalorder %s21, 5
      %p268 = por %p266, %p267
      %p269 = scmp.ne.s32.totalorder %s258, %s259
      %p270 = scmp.eq.s32.totalorder %s21, 0
      %p271 = por %p269, %p270
      %p272 = scmp.ne.s32.totalorder %s258, %s259
      %p273 = scmp.eq.s32.totalorder %s22, 5
      %p274 = por %p272, %p273
      %p276 = scmp.ne.s32.totalorder %s259, %s275
      %p277 = scmp.eq.s32.totalorder %s22, 0
      %p278 = por %p276, %p277
      %p279 = scmp.le.s32.totalorder 1, %s16
      %p280 = scmp.lt.s32.totalorder %s16, 7
      %p281 = pnand %p279, %p280
      %p282 = pneg %p281
      // Predicated region
      $region9: #{tpu_custom_call.1} parent=5 // pred_check
        _
      $region10: #{tpu_custom_call.1} parent=5 // pred_check_branch
        %284 = sbr.rel (%p281) target = $region12
      $region11: #{tpu_custom_call.1} parent=5 // pred_region
        %s285 = ssub.s32 %s16, 1
        // Predicated region
        $region13: #{tpu_custom_call.1} parent=11 // pred_check
          %p286 = pneg %p77
        $region14: #{tpu_custom_call.1} parent=11 // pred_check_branch
          %288 = sbr.rel (%p286) target = $region16
        $region15: #{tpu_custom_call.1} parent=11 // pred_region
          _
        $region16: #{tpu_custom_call.1} parent=11 // pred_fallthru
          _
        // Predicated region
        $region17: #{tpu_custom_call.1} parent=11 // pred_check
          %p289 = pneg %p98
        $region18: #{tpu_custom_call.1} parent=11 // pred_check_branch
          %291 = sbr.rel (%p289) target = $region20
        $region19: #{tpu_custom_call.1} parent=11 // pred_region
          _
        $region20: #{tpu_custom_call.1} parent=11 // pred_fallthru
          _
        // Predicated region
        $region21: #{tpu_custom_call.1} parent=11 // pred_check
          %p292 = pneg %p119
        $region22: #{tpu_custom_call.1} parent=11 // pred_check_branch
          %294 = sbr.rel (%p292) target = $region24
        $region23: #{tpu_custom_call.1} parent=11 // pred_region
          _
        $region24: #{tpu_custom_call.1} parent=11 // pred_fallthru
          _
        // Predicated region
        $region25: #{tpu_custom_call.1} parent=11 // pred_check
          %p295 = pneg %p140
        $region26: #{tpu_custom_call.1} parent=11 // pred_check_branch
          %297 = sbr.rel (%p295) target = $region28
        $region27: #{tpu_custom_call.1} parent=11 // pred_region
          _
        $region28: #{tpu_custom_call.1} parent=11 // pred_fallthru
          _
        // Predicated region
        $region29: #{tpu_custom_call.1} parent=11 // pred_check
          %p298 = pneg %p161
        $region30: #{tpu_custom_call.1} parent=11 // pred_check_branch
          %300 = sbr.rel (%p298) target = $region32
        $region31: #{tpu_custom_call.1} parent=11 // pred_region
          _
        $region32: #{tpu_custom_call.1} parent=11 // pred_fallthru
          _
        // Predicated region
        $region33: #{tpu_custom_call.1} parent=11 // pred_check
          %p301 = pneg %p182
        $region34: #{tpu_custom_call.1} parent=11 // pred_check_branch
          %303 = sbr.rel (%p301) target = $region36
        $region35: #{tpu_custom_call.1} parent=11 // pred_region
          _
        $region36: #{tpu_custom_call.1} parent=11 // pred_fallthru
          _
        // Predicated region
        $region37: #{tpu_custom_call.1} parent=11 // pred_check
          %p304 = pneg %p203
        $region38: #{tpu_custom_call.1} parent=11 // pred_check_branch
          %306 = sbr.rel (%p304) target = $region40
        $region39: #{tpu_custom_call.1} parent=11 // pred_region
          _
        $region40: #{tpu_custom_call.1} parent=11 // pred_fallthru
          _
        // Predicated region
        $region41: #{tpu_custom_call.1} parent=11 // pred_check
          %p307 = pneg %p224
        $region42: #{tpu_custom_call.1} parent=11 // pred_check_branch
          %309 = sbr.rel (%p307) target = $region44
        $region43: #{tpu_custom_call.1} parent=11 // pred_region
          _
        $region44: #{tpu_custom_call.1} parent=11 // pred_fallthru
          _
        // Predicated region
        $region45: #{tpu_custom_call.1} parent=11 // pred_check
          %p310 = pneg %p245
        $region46: #{tpu_custom_call.1} parent=11 // pred_check_branch
          %312 = sbr.rel (%p310) target = $region48
        $region47: #{tpu_custom_call.1} parent=11 // pred_region
          _
        $region48: #{tpu_custom_call.1} parent=11 // pred_fallthru
          _
      $region12: #{tpu_custom_call.1} parent=5 // pred_fallthru
        _
      %p313 = scmp.lt.s32.totalorder %s16, 6
      // Predicated region
      $region49: #{tpu_custom_call.1} parent=5 // pred_check
        %p314 = pneg %p313
      $region50: #{tpu_custom_call.1} parent=5 // pred_check_branch
        %316 = sbr.rel (%p314) target = $region52
      $region51: #{tpu_custom_call.1} parent=5 // pred_region
        // Predicated region
        $region53: #{tpu_custom_call.1} parent=51 // pred_check
          %p317 = pneg %p50
        $region54: #{tpu_custom_call.1} parent=51 // pred_check_branch
          %319 = sbr.rel (%p317) target = $region56
        $region55: #{tpu_custom_call.1} parent=51 // pred_region
          %s320 = sand.u32 %s40, 1
          %s321 = sand.u32 %s40, 1
          %s322 = smul.addr %s321, 16
          %s323 = scalar_lea.vmem [#allocation3], %s322
          %s324 = smul.addr %s23, 6
          %s325 = sadd.s32 %s24, %s324
          %s326 = smul.addr %s325, 8
          %s327 = scalar_lea.vmem %s0, %s326
          // Predicated region
          $region57: #{tpu_custom_call.1} parent=55 // pred_check
            _
          $region58: #{tpu_custom_call.1} parent=55 // pred_check_branch
            %329 = sbr.rel (0) target = $region60
          $region59: #{tpu_custom_call.1} parent=55 // pred_region
            // Predicated region
            $region61: #{tpu_custom_call.1} parent=59 // pred_check
              _
            $region62: #{tpu_custom_call.1} parent=59 // pred_check_branch
              %331 = sbr.rel (0) target = $region64
            $region63: #{tpu_custom_call.1} parent=59 // pred_region
              // Predicated region
              $region76: #{tpu_custom_call.1} parent=63 // pred_check
                _
              $region77: #{tpu_custom_call.1} parent=63 // pred_check_branch
                %349 = sbr.rel (0) target = $region79
              $region78: #{tpu_custom_call.1} parent=63 // pred_region
                loop: start=0, step=1, limit=1
                $region80: #{tpu_custom_call.1} parent=78 // loop_pre_header
                  _
                $region81: #{tpu_custom_call.1} parent=78 // loop_header
                  %s351 = sphi 0, %s355
                  %p352 = scmp.ge.s32.totalorder %s351, 1
                  %s356 = sphi %s327, %s327
                  %s357 = sphi %s323, %s323
                $region82: #{tpu_custom_call.1} parent=78 // loop_header_branch
                  %354 = sbr.rel (%p352) target = $region86
                $region83: #{tpu_custom_call.1} parent=78 // loop_body
                  %v358 = vld [vmem:[%s356] sm:$0xff]
                  %359 = vst [vmem:[%s357] sm:$0xff] %v358
                  %v360 = vld [vmem:[%s356 + $0x18] sm:$0xff]
                  %361 = vst [vmem:[%s357 + $0x8] sm:$0xff] %v360
                $region84: #{tpu_custom_call.1} parent=78 // loop_footer
                  %s355 = sadd.s32 1, %s351
                $region85: #{tpu_custom_call.1} parent=78 // loop_footer_branch
                  %350 = sbr.rel target = $region81
                $region86: #{tpu_custom_call.1} parent=78 // loop_exit
                  _
              $region79: #{tpu_custom_call.1} parent=63 // pred_fallthru
                _
              // Predicated region
              $region87: #{tpu_custom_call.1} parent=63 // pred_check
                _
              $region88: #{tpu_custom_call.1} parent=63 // pred_check_branch
                %363 = sbr.rel target = $region90
              $region89: #{tpu_custom_call.1} parent=63 // pred_region
                _
              $region90: #{tpu_custom_call.1} parent=63 // pred_fallthru
                _
            $region64: #{tpu_custom_call.1} parent=59 // pred_fallthru
              _
            // Predicated region
            $region65: #{tpu_custom_call.1} parent=59 // pred_check
              _
            $region66: #{tpu_custom_call.1} parent=59 // pred_check_branch
              %333 = sbr.rel target = $region68
            $region67: #{tpu_custom_call.1} parent=59 // pred_region
              %s335 = ssub.s32 256, 1
              loop: start=0, step=1, limit=1
              $region69: #{tpu_custom_call.1} parent=67 // loop_pre_header
                _
              $region70: #{tpu_custom_call.1} parent=67 // loop_header
                %s337 = sphi 0, %s341
                %p338 = scmp.ge.s32.totalorder %s337, 1
                %s342 = sphi %s327, %s327
                %s343 = sphi %s323, %s323
              $region71: #{tpu_custom_call.1} parent=67 // loop_header_branch
                %340 = sbr.rel (%p338) target = $region75
              $region72: #{tpu_custom_call.1} parent=67 // loop_body
                %v344 = vld [vmem:[%s342] sm:%s335]
                %345 = vst [vmem:[%s343] sm:%s335] %v344
                %v346 = vld [vmem:[%s342 + $0x18] sm:%s335]
                %347 = vst [vmem:[%s343 + $0x8] sm:%s335] %v346
              $region73: #{tpu_custom_call.1} parent=67 // loop_footer
                %s341 = sadd.s32 1, %s337
              $region74: #{tpu_custom_call.1} parent=67 // loop_footer_branch
                %336 = sbr.rel target = $region70
              $region75: #{tpu_custom_call.1} parent=67 // loop_exit
                _
            $region68: #{tpu_custom_call.1} parent=59 // pred_fallthru
              _
          $region60: #{tpu_custom_call.1} parent=55 // pred_fallthru
            _
          %364 = vnop
        $region56: #{tpu_custom_call.1} parent=51 // pred_fallthru
          _
      $region52: #{tpu_custom_call.1} parent=5 // pred_fallthru
        _
      %p365 = scmp.le.s32.totalorder 1, %s16
      %p366 = scmp.lt.s32.totalorder %s16, 7
      %p367 = pnand %p365, %p366
      %p368 = pneg %p367
      // Predicated region
      $region91: #{tpu_custom_call.1} parent=5 // pred_check
        _
      $region92: #{tpu_custom_call.1} parent=5 // pred_check_branch
        %370 = sbr.rel (%p367) target = $region94
      $region93: #{tpu_custom_call.1} parent=5 // pred_region
        %s371 = ssub.s32 %s16, 1
        %s372 = sand.u32 %s43, 1
        %s373 = sand.u32 %s43, 1
        %s374 = smul.addr %s373, 16
        %s375 = scalar_lea.vmem [#allocation3], %s374
        // Predicated region
        $region95: #{tpu_custom_call.1} parent=93 // pred_check
          %p376 = pneg %p56
        $region96: #{tpu_custom_call.1} parent=93 // pred_check_branch
          %378 = sbr.rel (%p376) target = $region98
        $region97: #{tpu_custom_call.1} parent=93 // pred_region
          _
        $region98: #{tpu_custom_call.1} parent=93 // pred_fallthru
          _
        %s379 = sand.u32 %s43, 1
        %s380 = sand.u32 %s43, 1
        %s381 = smul.addr %s380, 16
        %s382 = scalar_lea.vmem [#allocation3], %s381
        %p383 = pneg %p56
        %p384 = pneg %p53
        %p385 = pneg %p77
        %p386 = pneg %p74
        %p387 = pneg %p98
        %p388 = pneg %p95
        %p389 = pneg %p119
        %p390 = pneg %p116
        %p391 = pneg %p140
        %p392 = pneg %p137
        %p393 = pneg %p161
        %p394 = pneg %p158
        %p395 = pneg %p182
        %p396 = pneg %p179
        %p397 = pneg %p203
        %p398 = pneg %p200
        %p399 = pneg %p224
        %p400 = pneg %p221
        %p401 = pneg %p245
        %p402 = pneg %p242
        %p403 = pneg %p271
        %p404 = pneg %p268
        %p405 = scmp.lt.s32.totalorder %s25, 1
        %s406 = scalar_select %p405, %s25, 1
        %s407 = smul.addr %s406, 4
        %s408 = scalar_lea.vmem %s10, %s407
        %p409 = scmp.lt.s32.totalorder %s25, 1
        %s410 = scalar_select %p409, %s25, 1
        %s411 = smul.addr %s410, 4
        %s412 = scalar_lea.vmem %s10, %s411
        %p413 = scmp.eq.s32.totalorder %s26, 0
        // Predicated region
        $region99: #{tpu_custom_call.1} parent=93 // pred_check
          %p414 = pneg %p413
        $region100: #{tpu_custom_call.1} parent=93 // pred_check_branch
          %416 = sbr.rel (%p414) target = $region102
        $region101: #{tpu_custom_call.1} parent=93 // pred_region
          %vm417 = vcmask 7168
          %418 = vst.msk [vmem:[#allocation2] sm:$0xff] %vm417, 0.0
          %419 = vst.msk [vmem:[#allocation2 + $0x8] sm:$0xff] %vm417, 0.0
          %420 = vst.msk [vmem:[#allocation2 + $0x10] sm:$0xff] %vm417, 0.0
          %421 = vst.msk [vmem:[#allocation2 + $0x18] sm:$0xff] %vm417, 0.0
        $region102: #{tpu_custom_call.1} parent=93 // pred_fallthru
          _
        %v422 = vld [vmem:[%s375] sm:$0xff]
        %v423 = vld [vmem:[%s375 + $0x8] sm:$0xff]
        %v424 = vld [vmem:[%s1] sm:$0xff]
        %v425 = vld [vmem:[%s1 + $0x8] sm:$0xff]
        %v426 = vld [vmem:[%s1 + $0x10] sm:$0xff]
        %v427 = vld [vmem:[%s1 + $0x18] sm:$0xff]
        %v428 = vld [vmem:[%s2] sm:$0xff]
        %v429 = vld [vmem:[%s2 + $0x8] sm:$0xff]
        %v430 = vld [vmem:[%s2 + $0x10] sm:$0xff]
        %v431 = vld [vmem:[%s2 + $0x18] sm:$0xff]
        %433 = vset.pattern.permute.xlu0 0
        %434 = vperm.xlu0 %433, %v428
        %v435 = vpop.permute.xlu0 %434
        %438 = vset.pattern.permute.xlu0 0
        %439 = vperm.xlu0 %438, %v429
        %v440 = vpop.permute.xlu0 %439
        %443 = vset.pattern.permute.xlu0 0
        %444 = vperm.xlu0 %443, %v430
        %v445 = vpop.permute.xlu0 %444
        %448 = vset.pattern.permute.xlu0 0
        %449 = vperm.xlu0 %448, %v431
        %v450 = vpop.permute.xlu0 %449
        %vm452 = vcmask 130048
        %v454 = vsel %vm452, %v424, 0
        %v457 = vsel %vm452, %v425, 0
        %v460 = vsel %vm452, %v426, 0
        %v463 = vsel %vm452, %v427, 0
        %465 = vmatpush.msra.mxu0 0.0
        %466 = vmatpush.msra.mxu0 0.0
        %467 = vmatpush.msra.mxu0 0.0
        %468 = vmatpush.msra.mxu0 0.0
        %469 = vmatpush.msra.mxu0 0.0
        %470 = vmatpush.msra.mxu0 0.0
        %471 = vmatpush.msra.mxu0 0.0
        %472 = vmatpush.msra.mxu0 0.0
        %473 = vmatpush.msra.mxu0 0.0
        %474 = vmatpush.msra.mxu0 0.0
        %475 = vmatpush.msra.mxu0 0.0
        %476 = vmatpush.msra.mxu0 0.0
        %477 = vmatpush.msra.mxu0 0.0
        %478 = vmatpush.msra.mxu0 0.0
        %479 = vmatpush.msra.mxu0 %v423
        %480 = vmatpush.msra.mxu0 %v422
        %481 = vmatmul.f32.gmra.mxu0 %v454
        %v482 = vpop.f32.mrf.mxu0
        %v483 = vadd.f32 %v435, %v482
        %484 = vmatmul.f32.gmra.mxu0 %v457
        %v485 = vpop.f32.mrf.mxu0
        %v486 = vadd.f32 %v440, %v485
        %487 = vmatmul.f32.gmra.mxu0 %v460
        %v488 = vpop.f32.mrf.mxu0
        %v489 = vadd.f32 %v445, %v488
        %490 = vmatmul.f32.gmra.mxu0 %v463
        %v491 = vpop.f32.mrf.mxu0
        %v492 = vadd.f32 %v450, %v491
        %493 = vdwg.mxu0
        %v494 = vmax.f32 %v483, 0.0
        %v495 = vmax.f32 %v486, 0.0
        %v496 = vmax.f32 %v489, 0.0
        %v497 = vmax.f32 %v492, 0.0
        %v498 = vld [vmem:[%s3] sm:$0xff]
        %v499 = vld [vmem:[%s3 + $0x8] sm:$0xff]
        %v500 = vld [vmem:[%s3 + $0x10] sm:$0xff]
        %v501 = vld [vmem:[%s3 + $0x18] sm:$0xff]
        %v502 = vld [vmem:[%s3 + $0x20] sm:$0xff]
        %v503 = vld [vmem:[%s3 + $0x28] sm:$0xff]
        %v504 = vld [vmem:[%s4] sm:$0xff]
        %v505 = vld [vmem:[%s4 + $0x8] sm:$0xff]
        %v506 = vld [vmem:[%s4 + $0x10] sm:$0xff]
        %v507 = vld [vmem:[%s4 + $0x18] sm:$0xff]
        %v508 = vld [vmem:[%s4 + $0x20] sm:$0xff]
        %v509 = vld [vmem:[%s4 + $0x28] sm:$0xff]
        %511 = vset.pattern.permute.xlu0 0
        %512 = vperm.xlu0 %511, %v504
        %v513 = vpop.permute.xlu0 %512
        %516 = vset.pattern.permute.xlu0 0
        %517 = vperm.xlu0 %516, %v505
        %v518 = vpop.permute.xlu0 %517
        %521 = vset.pattern.permute.xlu0 0
        %522 = vperm.xlu0 %521, %v506
        %v523 = vpop.permute.xlu0 %522
        %526 = vset.pattern.permute.xlu0 0
        %527 = vperm.xlu0 %526, %v507
        %v528 = vpop.permute.xlu0 %527
        %531 = vset.pattern.permute.xlu0 0
        %532 = vperm.xlu0 %531, %v508
        %v533 = vpop.permute.xlu0 %532
        %536 = vset.pattern.permute.xlu0 0
        %537 = vperm.xlu0 %536, %v509
        %v538 = vpop.permute.xlu0 %537
        %vm540 = vcmask 261120
        %v542 = vsel %vm540, %v498, 0
        %v545 = vsel %vm540, %v499, 0
        %v548 = vsel %vm540, %v500, 0
        %v551 = vsel %vm540, %v501, 0
        %v554 = vsel %vm540, %v502, 0
        %v557 = vsel %vm540, %v503, 0
        %559 = vmatpush.msra.mxu0 0.0
        %560 = vmatpush.msra.mxu0 0.0
        %561 = vmatpush.msra.mxu0 0.0
        %562 = vmatpush.msra.mxu0 0.0
        %563 = vmatpush.msra.mxu0 0.0
        %564 = vmatpush.msra.mxu0 0.0
        %565 = vmatpush.msra.mxu0 0.0
        %566 = vmatpush.msra.mxu0 0.0
        %567 = vmatpush.msra.mxu0 0.0
        %568 = vmatpush.msra.mxu0 0.0
        %569 = vmatpush.msra.mxu0 0.0
        %570 = vmatpush.msra.mxu0 0.0
        %571 = vmatpush.msra.mxu0 %v497
        %572 = vmatpush.msra.mxu0 %v496
        %573 = vmatpush.msra.mxu0 %v495
        %574 = vmatpush.msra.mxu0 %v494
        %575 = vmatmul.f32.gmra.mxu0 %v542
        %v576 = vpop.f32.mrf.mxu0
        %v577 = vadd.f32 %v513, %v576
        %578 = vmatmul.f32.gmra.mxu0 %v545
        %v579 = vpop.f32.mrf.mxu0
        %v580 = vadd.f32 %v518, %v579
        %581 = vmatmul.f32.gmra.mxu0 %v548
        %v582 = vpop.f32.mrf.mxu0
        %v583 = vadd.f32 %v523, %v582
        %584 = vmatmul.f32.gmra.mxu0 %v551
        %v585 = vpop.f32.mrf.mxu0
        %v586 = vadd.f32 %v528, %v585
        %587 = vmatmul.f32.gmra.mxu0 %v554
        %v588 = vpop.f32.mrf.mxu0
        %v589 = vadd.f32 %v533, %v588
        %590 = vmatmul.f32.gmra.mxu0 %v557
        %v591 = vpop.f32.mrf.mxu0
        %v592 = vadd.f32 %v538, %v591
        %593 = vdwg.mxu0
        %v594 = vmax.f32 %v577, 0.0
        %v595 = vmax.f32 %v580, 0.0
        %v596 = vmax.f32 %v583, 0.0
        %v597 = vmax.f32 %v586, 0.0
        %v598 = vmax.f32 %v589, 0.0
        %v599 = vmax.f32 %v592, 0.0
        %v600 = vld [vmem:[%s5] sm:$0xff]
        %v601 = vld [vmem:[%s5 + $0x8] sm:$0xff]
        %v602 = vld [vmem:[%s5 + $0x10] sm:$0xff]
        %v603 = vld [vmem:[%s5 + $0x18] sm:$0xff]
        %v604 = vld [vmem:[%s5 + $0x20] sm:$0xff]
        %v605 = vld [vmem:[%s5 + $0x28] sm:$0xff]
        %v606 = vld [vmem:[%s6] sm:$0xff]
        %v607 = vld [vmem:[%s6 + $0x8] sm:$0xff]
        %v608 = vld [vmem:[%s6 + $0x10] sm:$0xff]
        %v609 = vld [vmem:[%s6 + $0x18] sm:$0xff]
        %v610 = vld [vmem:[%s6 + $0x20] sm:$0xff]
        %v611 = vld [vmem:[%s6 + $0x28] sm:$0xff]
        %613 = vset.pattern.permute.xlu0 0
        %614 = vperm.xlu0 %613, %v606
        %v615 = vpop.permute.xlu0 %614
        %618 = vset.pattern.permute.xlu0 0
        %619 = vperm.xlu0 %618, %v607
        %v620 = vpop.permute.xlu0 %619
        %623 = vset.pattern.permute.xlu0 0
        %624 = vperm.xlu0 %623, %v608
        %v625 = vpop.permute.xlu0 %624
        %628 = vset.pattern.permute.xlu0 0
        %629 = vperm.xlu0 %628, %v609
        %v630 = vpop.permute.xlu0 %629
        %633 = vset.pattern.permute.xlu0 0
        %634 = vperm.xlu0 %633, %v610
        %v635 = vpop.permute.xlu0 %634
        %638 = vset.pattern.permute.xlu0 0
        %639 = vperm.xlu0 %638, %v611
        %v640 = vpop.permute.xlu0 %639
        %vm642 = vcmask 392192
        %v644 = vsel %vm642, %v600, 0
        %v647 = vsel %vm642, %v601, 0
        %v650 = vsel %vm642, %v602, 0
        %v653 = vsel %vm642, %v603, 0
        %v656 = vsel %vm642, %v604, 0
        %v659 = vsel %vm642, %v605, 0
        %661 = vmatpush.msra.mxu0 0.0
        %662 = vmatpush.msra.mxu0 0.0
        %663 = vmatpush.msra.mxu0 0.0
        %664 = vmatpush.msra.mxu0 0.0
        %665 = vmatpush.msra.mxu0 0.0
        %666 = vmatpush.msra.mxu0 0.0
        %667 = vmatpush.msra.mxu0 0.0
        %668 = vmatpush.msra.mxu0 0.0
        %669 = vmatpush.msra.mxu0 0.0
        %670 = vmatpush.msra.mxu0 0.0
        %671 = vmatpush.msra.mxu0 %v599
        %672 = vmatpush.msra.mxu0 %v598
        %673 = vmatpush.msra.mxu0 %v597
        %674 = vmatpush.msra.mxu0 %v596
        %675 = vmatpush.msra.mxu0 %v595
        %676 = vmatpush.msra.mxu0 %v594
        %677 = vmatmul.f32.gmra.mxu0 %v644
        %v678 = vpop.f32.mrf.mxu0
        %v679 = vadd.f32 %v615, %v678
        %680 = vmatmul.f32.gmra.mxu0 %v647
        %v681 = vpop.f32.mrf.mxu0
        %v682 = vadd.f32 %v620, %v681
        %683 = vmatmul.f32.gmra.mxu0 %v650
        %v684 = vpop.f32.mrf.mxu0
        %v685 = vadd.f32 %v625, %v684
        %686 = vmatmul.f32.gmra.mxu0 %v653
        %v687 = vpop.f32.mrf.mxu0
        %v688 = vadd.f32 %v630, %v687
        %689 = vmatmul.f32.gmra.mxu0 %v656
        %v690 = vpop.f32.mrf.mxu0
        %v691 = vadd.f32 %v635, %v690
        %692 = vmatmul.f32.gmra.mxu0 %v659
        %v693 = vpop.f32.mrf.mxu0
        %v694 = vadd.f32 %v640, %v693
        %695 = vdwg.mxu0
        %v696 = vmax.f32 %v679, 0.0
        %v697 = vmax.f32 %v682, 0.0
        %v698 = vmax.f32 %v685, 0.0
        %v699 = vmax.f32 %v688, 0.0
        %v700 = vmax.f32 %v691, 0.0
        %v701 = vmax.f32 %v694, 0.0
        %v702 = vld [vmem:[%s7] sm:$0xff]
        %v703 = vld [vmem:[%s7 + $0x8] sm:$0xff]
        %v704 = vld [vmem:[%s7 + $0x10] sm:$0xff]
        %v705 = vld [vmem:[%s7 + $0x18] sm:$0xff]
        %v706 = vld [vmem:[%s8] sm:$0xff]
        %v707 = vld [vmem:[%s8 + $0x8] sm:$0xff]
        %v708 = vld [vmem:[%s8 + $0x10] sm:$0xff]
        %v709 = vld [vmem:[%s8 + $0x18] sm:$0xff]
        %711 = vset.pattern.permute.xlu0 0
        %712 = vperm.xlu0 %711, %v706
        %v713 = vpop.permute.xlu0 %712
        %716 = vset.pattern.permute.xlu0 0
        %717 = vperm.xlu0 %716, %v707
        %v718 = vpop.permute.xlu0 %717
        %721 = vset.pattern.permute.xlu0 0
        %722 = vperm.xlu0 %721, %v708
        %v723 = vpop.permute.xlu0 %722
        %726 = vset.pattern.permute.xlu0 0
        %727 = vperm.xlu0 %726, %v709
        %v728 = vpop.permute.xlu0 %727
        %v731 = vsel %vm642, %v702, 0
        %v734 = vsel %vm642, %v703, 0
        %v737 = vsel %vm642, %v704, 0
        %v740 = vsel %vm642, %v705, 0
        %742 = vmatpush.msra.mxu0 0.0
        %743 = vmatpush.msra.mxu0 0.0
        %744 = vmatpush.msra.mxu0 0.0
        %745 = vmatpush.msra.mxu0 0.0
        %746 = vmatpush.msra.mxu0 0.0
        %747 = vmatpush.msra.mxu0 0.0
        %748 = vmatpush.msra.mxu0 0.0
        %749 = vmatpush.msra.mxu0 0.0
        %750 = vmatpush.msra.mxu0 0.0
        %751 = vmatpush.msra.mxu0 0.0
        %752 = vmatpush.msra.mxu0 %v701
        %753 = vmatpush.msra.mxu0 %v700
        %754 = vmatpush.msra.mxu0 %v699
        %755 = vmatpush.msra.mxu0 %v698
        %756 = vmatpush.msra.mxu0 %v697
        %757 = vmatpush.msra.mxu0 %v696
        %758 = vmatmul.f32.gmra.mxu0 %v731
        %v759 = vpop.f32.mrf.mxu0
        %v760 = vadd.f32 %v713, %v759
        %761 = vmatmul.f32.gmra.mxu0 %v734
        %v762 = vpop.f32.mrf.mxu0
        %v763 = vadd.f32 %v718, %v762
        %764 = vmatmul.f32.gmra.mxu0 %v737
        %v765 = vpop.f32.mrf.mxu0
        %v766 = vadd.f32 %v723, %v765
        %767 = vmatmul.f32.gmra.mxu0 %v740
        %v768 = vpop.f32.mrf.mxu0
        %v769 = vadd.f32 %v728, %v768
        %770 = vdwg.mxu0
        %s771 = smul.u32 %s26, 128
        %v772 = vlaneseq
        %v773 = vand.u32 %v772, 127
        %v774 = vstv %s771
        %v775 = vadd.s32 %v774, %v773
        %vm776 = vcmp.lt.s32.totalorder %v775, 300
        %v777 = vsel %vm776, %v760, 0.0
        %v778 = vsel %vm776, %v763, 0.0
        %v779 = vsel %vm776, %v766, 0.0
        %v780 = vsel %vm776, %v769, 0.0
        %v781 = vld [vmem:[#allocation2] sm:$0xff]
        %v782 = vld [vmem:[#allocation2 + $0x8] sm:$0xff]
        %v783 = vld [vmem:[#allocation2 + $0x10] sm:$0xff]
        %v784 = vld [vmem:[#allocation2 + $0x18] sm:$0xff]
        %785 = vadd.xlane.f32.xlu0 %v777
        %v786 = vpop.xlane.xlu0 %785
        %787 = vadd.xlane.f32.xlu0 %v778
        %v788 = vpop.xlane.xlu0 %787
        %789 = vadd.xlane.f32.xlu0 %v779
        %v790 = vpop.xlane.xlu0 %789
        %791 = vadd.xlane.f32.xlu0 %v780
        %v792 = vpop.xlane.xlu0 %791
        %v793 = vadd.f32 %v781, %v786
        %v794 = vadd.f32 %v782, %v788
        %v795 = vadd.f32 %v783, %v790
        %v796 = vadd.f32 %v784, %v792
        %vm797 = vcmask 7168
        %798 = vst.msk [vmem:[#allocation2] sm:$0xff] %vm797, %v793
        %799 = vst.msk [vmem:[#allocation2 + $0x8] sm:$0xff] %vm797, %v794
        %800 = vst.msk [vmem:[#allocation2 + $0x10] sm:$0xff] %vm797, %v795
        %801 = vst.msk [vmem:[#allocation2 + $0x18] sm:$0xff] %vm797, %v796
        %p802 = scmp.eq.s32.totalorder %s26, 2
        // Predicated region
        $region103: #{tpu_custom_call.1} parent=93 // pred_check
          %p803 = pneg %p802
        $region104: #{tpu_custom_call.1} parent=93 // pred_check_branch
          %805 = sbr.rel (%p803) target = $region106
        $region105: #{tpu_custom_call.1} parent=93 // pred_region
          %v806 = vld [vmem:[#allocation2] sm:$0xff]
          %v807 = vld [vmem:[#allocation2 + $0x8] sm:$0xff]
          %v808 = vld [vmem:[#allocation2 + $0x10] sm:$0xff]
          %v809 = vld [vmem:[#allocation2 + $0x18] sm:$0xff]
          %v810 = vmul.f32 %v806, 0.0033333334
          %v811 = vmul.f32 %v807, 0.0033333334
          %v812 = vmul.f32 %v808, 0.0033333334
          %v813 = vmul.f32 %v809, 0.0033333334
          %v814 = vld [vmem:[%s9] sm:$0xf]
          %v816 = vsel %vm540, %v814, 0
          %818 = vmatpush.msra.mxu0 0.0
          %819 = vmatpush.msra.mxu0 0.0
          %820 = vmatpush.msra.mxu0 0.0
          %821 = vmatpush.msra.mxu0 0.0
          %822 = vmatpush.msra.mxu0 0.0
          %823 = vmatpush.msra.mxu0 0.0
          %824 = vmatpush.msra.mxu0 0.0
          %825 = vmatpush.msra.mxu0 0.0
          %826 = vmatpush.msra.mxu0 0.0
          %827 = vmatpush.msra.mxu0 0.0
          %828 = vmatpush.msra.mxu0 0.0
          %829 = vmatpush.msra.mxu0 0.0
          %830 = vmatpush.msra.mxu0 %v813
          %831 = vmatpush.msra.mxu0 %v812
          %832 = vmatpush.msra.mxu0 %v811
          %833 = vmatpush.msra.mxu0 %v810
          %834 = vmatmul.f32.gmra.mxu0 %v816
          %v835 = vpop.f32.mrf.mxu0
          %v836 = vadd.f32 0.0, %v835
          %837 = vdwg.mxu0
          %v838 = vtanh.pop %v836
          %vm839 = vcmask 3072
          %840 = vst.msk [vmem:[%s412] sm:$0xf] %vm839, %v838
        $region106: #{tpu_custom_call.1} parent=93 // pred_fallthru
          _
        %p841 = scmp.lt.s32.totalorder %s25, 1
        %s842 = scalar_select %p841, %s25, 1
        %s843 = smul.addr %s842, 4
        %s844 = scalar_lea.vmem %s10, %s843
        // Predicated region
        $region107: #{tpu_custom_call.1} parent=93 // pred_check
          %p845 = pneg %p268
        $region108: #{tpu_custom_call.1} parent=93 // pred_check_branch
          %847 = sbr.rel (%p845) target = $region110
        $region109: #{tpu_custom_call.1} parent=93 // pred_region
          _
        $region110: #{tpu_custom_call.1} parent=93 // pred_fallthru
          _
      $region94: #{tpu_custom_call.1} parent=5 // pred_fallthru
        _
      %p848 = scmp.le.s32.totalorder 2, %s16
      // Predicated region
      $region111: #{tpu_custom_call.1} parent=5 // pred_check
        %p849 = pneg %p848
      $region112: #{tpu_custom_call.1} parent=5 // pred_check_branch
        %851 = sbr.rel (%p849) target = $region114
      $region113: #{tpu_custom_call.1} parent=5 // pred_region
        %s852 = ssub.s32 %s16, 2
        // Predicated region
        $region115: #{tpu_custom_call.1} parent=113 // pred_check
          %p853 = pneg %p274
        $region116: #{tpu_custom_call.1} parent=113 // pred_check_branch
          %855 = sbr.rel (%p853) target = $region118
        $region117: #{tpu_custom_call.1} parent=113 // pred_region
          %p856 = scmp.lt.s32.totalorder %s27, 1
          %s857 = scalar_select %p856, %s27, 1
          %s858 = smul.addr %s857, 4
          %s859 = scalar_lea.vmem %s10, %s858
        $region118: #{tpu_custom_call.1} parent=113 // pred_fallthru
          _
      $region114: #{tpu_custom_call.1} parent=5 // pred_fallthru
        _
    $region6: #{tpu_custom_call.1} parent=1 // loop_footer
      %s20 = sadd.s32 1, %s16
    $region7: #{tpu_custom_call.1} parent=1 // loop_footer_branch
      %15 = sbr.rel target = $region3
    $region8: #{tpu_custom_call.1} parent=1 // loop_exit
      _

</llo_original>
